<compile_context>
chip_gen: v7x
topology: tpu7x:2x2x1
jax: 0.10.0
libtpu: 0.0.40
codegen_flags: <defaults>
</compile_context>

<pallas_src>
import functools

import jax
import jax.numpy as jnp
from jax import lax
from jax.experimental import pallas as pl
from jax.experimental.pallas import tpu as pltpu


def _round_up(x, m):
    return ((x + m - 1) // m) * m


def _redu_vector_kernel(z_ref, et_ref, cst_ref, gam_ref, out_ref, cz_ref, *,
                        lmbda, num_classes):
    """One (TN, Dp) row-tile of the ReduNet vector-layer update.

    et_ref  : (Dp, Dp)    resident, = eta * E^T   (pre-scaled / pre-transposed)
    cst_ref : (C, Dp, Dp) resident, = C_j^T
    gam_ref : (C,) SMEM,  = eta * gam
    cz_ref  : VMEM scratch (C, TN, Dp) fp32 holding per-class Cz tiles.
    """
    Zf = z_ref[...].astype(jnp.float32)      # fp32 copy for elementwise math
    Zmm = Zf.astype(et_ref.dtype)            # MXU operand dtype (bf16 by default)

    # Expansion term (eta already folded into et_ref): eta * Z @ E^T.
    expd = jnp.dot(Zmm, et_ref[...], preferred_element_type=jnp.float32)

    # Per-class compression matmuls; stash Cz_j in VMEM scratch, keep only the
    # per-row squared norms live.
    sq = []
    for c in range(num_classes):             # static unroll, C is small
        cz = jnp.dot(Zmm, cst_ref[c], preferred_element_type=jnp.float32)
        cz_ref[c] = cz
        sq.append(jnp.sum(cz * cz, axis=-1, keepdims=True))   # (TN, 1)

    # Soft class assignment: softmax_j(-lmbda * max(||Cz_j||, 1e-8)), fp32 math.
    logits = [-lmbda * jnp.sqrt(jnp.maximum(s, 1e-16)) for s in sq]
    m = logits[0]
    for c in range(1, num_classes):
        m = jnp.maximum(m, logits[c])
    p = [jnp.exp(l - m) for l in logits]
    denom = p[0]
    for c in range(1, num_classes):
        denom = denom + p[c]
    inv_denom = pl.reciprocal(denom, approx=True)              # EUP slot, ~free

    # clus = eta * sum_j gam_j * pi_j * Cz_j  (eta folded into gam_ref scalars),
    # built as a running accumulator instead of a (C, TN, Dp) stack+reduce.
    clus = (gam_ref[0] * p[0] * inv_denom) * cz_ref[0]
    for c in range(1, num_classes):
        clus = clus + (gam_ref[c] * p[c] * inv_denom) * cz_ref[c]

    # Residual update + row-wise L2 normalize via rsqrt (no divide on VALU).
    Znew = Zf + expd - clus
    ssq = jnp.sum(Znew * Znew, axis=-1, keepdims=True)
    out_ref[...] = (Znew * lax.rsqrt(jnp.maximum(ssq, 1e-24))).astype(out_ref.dtype)


def redu_layer_forward(Z, E, Cs, gam, *, eta=0.1, lmbda=5.0, block_n=256,
                       compute_dtype=jnp.bfloat16):
    """ReduNet vector-layer forward. Z: (N, D); E: (D, D); Cs: (C, D, D); gam: (C,)."""
    N, D = Z.shape
    C = Cs.shape[0]

    # Lane-dense feature dim (multiple of 128) and sublane-aligned row tiles.
    Dp = _round_up(D, 128)
    TN = block_n if N >= block_n else _round_up(max(N, 1), 8)
    Np = _round_up(N, TN)

    # Fold eta into the weights once (host side), pre-transpose so the kernel
    # contracts Z's last dim against the weight's first dim (no in-kernel
    # relayout), and cast weights to the MXU compute dtype for VMEM residency.
    Et = (eta * E.T).astype(compute_dtype)                   # (D, D)
    Cst = jnp.swapaxes(Cs, -1, -2).astype(compute_dtype)     # (C, D, D)
    gam_eta = (eta * gam).astype(jnp.float32)                # (C,)

    # Zero padding keeps the math exact: padded feature columns stay zero end to
    # end, padded rows normalize to zero and are sliced off.
    Zp = jnp.pad(Z, ((0, Np - N), (0, Dp - D)))
    Etp = jnp.pad(Et, ((0, Dp - D), (0, Dp - D)))
    Cstp = jnp.pad(Cst, ((0, 0), (0, Dp - D), (0, Dp - D)))

    kernel = functools.partial(_redu_vector_kernel,
                               lmbda=float(lmbda), num_classes=C)

    # VMEM budget: resident weights + double-buffered Z/out tiles + Cz scratch.
    w_bytes = (1 + C) * Dp * Dp * jnp.dtype(compute_dtype).itemsize
    tile_bytes = TN * Dp * jnp.dtype(Zp.dtype).itemsize
    est = w_bytes + 4 * tile_bytes + C * TN * Dp * 4 + (2 << 20)
    vmem_limit = int(min(100 * 1024 * 1024, max(32 * 1024 * 1024, est)))

    out = pl.pallas_call(
        kernel,
        out_shape=jax.ShapeDtypeStruct((Np, Dp), Z.dtype),
        grid=(Np // TN,),
        in_specs=[
            pl.BlockSpec((TN, Dp), lambda i: (i, 0)),            # Z row-tile
            pl.BlockSpec((Dp, Dp), lambda i: (0, 0)),            # eta*E^T (resident)
            pl.BlockSpec((C, Dp, Dp), lambda i: (0, 0, 0)),      # C_j^T   (resident)
            pl.BlockSpec(memory_space=pltpu.MemorySpace.SMEM),   # eta*gam scalars
        ],
        out_specs=pl.BlockSpec((TN, Dp), lambda i: (i, 0)),
        scratch_shapes=[pltpu.VMEM((C, TN, Dp), jnp.float32)],
        compiler_params=pltpu.CompilerParams(
            dimension_semantics=("parallel",),
            vmem_limit_bytes=vmem_limit),
    )(Zp, Etp, Cstp, gam_eta)
    return out[:N, :D]


def _reference_forward(Z, E, Cs, gam, *, eta=0.1, lmbda=5.0):
    Z = Z.astype(jnp.float32)
    expd = eta * (Z @ E.T)
    Cz = jnp.einsum('nd,ced->cne', Z, Cs)
    norm = jnp.maximum(jnp.linalg.norm(Cz, axis=-1), 1e-8)
    pred = jax.nn.softmax(-lmbda * norm, axis=0)
    clus = eta * jnp.sum(gam[:, None, None] * pred[:, :, None] * Cz, axis=0)
    Zn = Z + expd - clus
    return Zn / jnp.maximum(jnp.linalg.norm(Zn, axis=-1, keepdims=True), 1e-12)


if __name__ == "__main__":
    N, D, C = 30, 32, 4          # batch, hidden, num_classes (small demo shapes)
    eta, lmbda = 0.1, 5.0

    key = jax.random.PRNGKey(0)
    kz, ke, kc = jax.random.split(key, 3)

    Z = jax.random.normal(kz, (N, D), dtype=jnp.float32)
    # Deterministic synthetic parameters (shapes match E.weight / Cs.{j}.weight / gam).
    E = 0.1 * jax.random.normal(ke, (D, D), dtype=jnp.float32)
    Cs = 0.1 * jax.random.normal(kc, (C, D, D), dtype=jnp.float32)
    gam = jnp.ones((C,), dtype=jnp.float32) / C

    # block_n=8 exercises a multi-step grid (Np=32 -> 4 row-tiles) at demo scale;
    # real workloads use the default 256-row tiles.
    out = redu_layer_forward(Z, E, Cs, gam, eta=eta, lmbda=lmbda, block_n=8)
    out = jax.block_until_ready(out)

    ref = _reference_forward(Z, E, Cs, gam, eta=eta, lmbda=lmbda)
    assert out.shape == (N, D)
    # bf16 MXU operands with fp32 accumulation -> slightly looser tolerance.
    assert jnp.allclose(out, ref, atol=2e-3, rtol=2e-3), \
        float(jnp.max(jnp.abs(out - ref)))

    print("KERNEL_OK")
</pallas_src>

<mosaic_0001>
module attributes {stable_mosaic.version = 11 : i64} {
  func.func @_redu_vector_kernel(%arg0: i32, %arg1: memref<8x128xf32, #tpu.memory_space<vmem>>, %arg2: memref<128x128xbf16, #tpu.memory_space<vmem>>, %arg3: memref<4x128x128xbf16, #tpu.memory_space<vmem>>, %arg4: memref<4xf32, #tpu.memory_space<smem>>, %arg5: memref<8x128xf32, #tpu.memory_space<vmem>>, %arg6: memref<4x8x128xf32, #tpu.memory_space<vmem>>) attributes {dimension_semantics = [#tpu.dimension_semantics<parallel>], iteration_bounds = array<i64: 4>, scalar_prefetch = 0 : i64, scratch_operands = 1 : i64, tpu.core_type = #tpu.core_type<tc>, window_params = [{transform_indices = @transform_0, window_bounds = array<i64: 8, 128>}, {pipeline_mode = #tpu.pipeline_mode<synchronous>, transform_indices = @transform_1, window_bounds = array<i64: 128, 128>}, {pipeline_mode = #tpu.pipeline_mode<synchronous>, transform_indices = @transform_2, window_bounds = array<i64: 4, 128, 128>}, {transform_indices = @transform_3, window_bounds = array<i64: 4>}, {transform_indices = @transform_4, window_bounds = array<i64: 8, 128>}]} {
    %c0 = arith.constant 0 : index
    %c0_0 = arith.constant 0 : index
    %0 = vector.load %arg1[%c0, %c0_0] : memref<8x128xf32, #tpu.memory_space<vmem>>, vector<8x128xf32>
    %1 = arith.truncf %0 : vector<8x128xf32> to vector<8x128xbf16>
    %c0_1 = arith.constant 0 : index
    %c0_2 = arith.constant 0 : index
    %2 = vector.load %arg2[%c0_1, %c0_2] : memref<128x128xbf16, #tpu.memory_space<vmem>>, vector<128x128xbf16>
    %cst = arith.constant dense<0.000000e+00> : vector<8x128xf32>
    %3 = tpu.matmul %1, %2, %cst {dimension_numbers = #tpu.dot_dimension_numbers<[1], [0], [0], [1], [0, 0, 1, 1], [], []>} : vector<8x128xbf16>, vector<128x128xbf16>, vector<8x128xf32> -> vector<8x128xf32>
    %c0_3 = arith.constant 0 : index
    %c0_4 = arith.constant 0 : index
    %c0_5 = arith.constant 0 : index
    %4 = vector.load %arg3[%c0_3, %c0_4, %c0_5] : memref<4x128x128xbf16, #tpu.memory_space<vmem>>, vector<1x128x128xbf16>
    %5 = vector.shape_cast %4 : vector<1x128x128xbf16> to vector<128x128xbf16>
    %cst_6 = arith.constant dense<0.000000e+00> : vector<8x128xf32>
    %6 = tpu.matmul %1, %5, %cst_6 {dimension_numbers = #tpu.dot_dimension_numbers<[1], [0], [0], [1], [0, 0, 1, 1], [], []>} : vector<8x128xbf16>, vector<128x128xbf16>, vector<8x128xf32> -> vector<8x128xf32>
    %c0_7 = arith.constant 0 : index
    %c0_8 = arith.constant 0 : index
    %c0_9 = arith.constant 0 : index
    %7 = vector.load %arg6[%c0_7, %c0_8, %c0_9] : memref<4x8x128xf32, #tpu.memory_space<vmem>>, vector<1x8x128xf32>
    %8 = vector.shape_cast %7 : vector<1x8x128xf32> to vector<8x128xf32>
    %9 = vector.shape_cast %6 : vector<8x128xf32> to vector<1x8x128xf32>
    tpu.vector_store %arg6[%c0_7, %c0_8, %c0_9], %9 {strides = array<i32>} : memref<4x8x128xf32, #tpu.memory_space<vmem>>, vector<1x8x128xf32>,
    %10 = arith.mulf %6, %6 : vector<8x128xf32>
    %cst_10 = arith.constant dense<0.000000e+00> : vector<8xf32>
    %11 = vector.multi_reduction <add>, %10, %cst_10 [1] : vector<8x128xf32> to vector<8xf32>
    %12 = vector.shape_cast %11 : vector<8xf32> to vector<8x1xf32>
    %c1 = arith.constant 1 : index
    %c0_11 = arith.constant 0 : index
    %c0_12 = arith.constant 0 : index
    %13 = vector.load %arg3[%c1, %c0_11, %c0_12] : memref<4x128x128xbf16, #tpu.memory_space<vmem>>, vector<1x128x128xbf16>
    %14 = vector.shape_cast %13 : vector<1x128x128xbf16> to vector<128x128xbf16>
    %cst_13 = arith.constant dense<0.000000e+00> : vector<8x128xf32>
    %15 = tpu.matmul %1, %14, %cst_13 {dimension_numbers = #tpu.dot_dimension_numbers<[1], [0], [0], [1], [0, 0, 1, 1], [], []>} : vector<8x128xbf16>, vector<128x128xbf16>, vector<8x128xf32> -> vector<8x128xf32>
    %c1_14 = arith.constant 1 : index
    %c0_15 = arith.constant 0 : index
    %c0_16 = arith.constant 0 : index
    %16 = vector.load %arg6[%c1_14, %c0_15, %c0_16] : memref<4x8x128xf32, #tpu.memory_space<vmem>>, vector<1x8x128xf32>
    %17 = vector.shape_cast %16 : vector<1x8x128xf32> to vector<8x128xf32>
    %18 = vector.shape_cast %15 : vector<8x128xf32> to vector<1x8x128xf32>
    tpu.vector_store %arg6[%c1_14, %c0_15, %c0_16], %18 {strides = array<i32>} : memref<4x8x128xf32, #tpu.memory_space<vmem>>, vector<1x8x128xf32>,
    %19 = arith.mulf %15, %15 : vector<8x128xf32>
    %cst_17 = arith.constant dense<0.000000e+00> : vector<8xf32>
    %20 = vector.multi_reduction <add>, %19, %cst_17 [1] : vector<8x128xf32> to vector<8xf32>
    %21 = vector.shape_cast %20 : vector<8xf32> to vector<8x1xf32>
    %c2 = arith.constant 2 : index
    %c0_18 = arith.constant 0 : index
    %c0_19 = arith.constant 0 : index
    %22 = vector.load %arg3[%c2, %c0_18, %c0_19] : memref<4x128x128xbf16, #tpu.memory_space<vmem>>, vector<1x128x128xbf16>
    %23 = vector.shape_cast %22 : vector<1x128x128xbf16> to vector<128x128xbf16>
    %cst_20 = arith.constant dense<0.000000e+00> : vector<8x128xf32>
    %24 = tpu.matmul %1, %23, %cst_20 {dimension_numbers = #tpu.dot_dimension_numbers<[1], [0], [0], [1], [0, 0, 1, 1], [], []>} : vector<8x128xbf16>, vector<128x128xbf16>, vector<8x128xf32> -> vector<8x128xf32>
    %c2_21 = arith.constant 2 : index
    %c0_22 = arith.constant 0 : index
    %c0_23 = arith.constant 0 : index
    %25 = vector.load %arg6[%c2_21, %c0_22, %c0_23] : memref<4x8x128xf32, #tpu.memory_space<vmem>>, vector<1x8x128xf32>
    %26 = vector.shape_cast %25 : vector<1x8x128xf32> to vector<8x128xf32>
    %27 = vector.shape_cast %24 : vector<8x128xf32> to vector<1x8x128xf32>
    tpu.vector_store %arg6[%c2_21, %c0_22, %c0_23], %27 {strides = array<i32>} : memref<4x8x128xf32, #tpu.memory_space<vmem>>, vector<1x8x128xf32>,
    %28 = arith.mulf %24, %24 : vector<8x128xf32>
    %cst_24 = arith.constant dense<0.000000e+00> : vector<8xf32>
    %29 = vector.multi_reduction <add>, %28, %cst_24 [1] : vector<8x128xf32> to vector<8xf32>
    %30 = vector.shape_cast %29 : vector<8xf32> to vector<8x1xf32>
    %c3 = arith.constant 3 : index
    %c0_25 = arith.constant 0 : index
    %c0_26 = arith.constant 0 : index
    %31 = vector.load %arg3[%c3, %c0_25, %c0_26] : memref<4x128x128xbf16, #tpu.memory_space<vmem>>, vector<1x128x128xbf16>
    %32 = vector.shape_cast %31 : vector<1x128x128xbf16> to vector<128x128xbf16>
    %cst_27 = arith.constant dense<0.000000e+00> : vector<8x128xf32>
    %33 = tpu.matmul %1, %32, %cst_27 {dimension_numbers = #tpu.dot_dimension_numbers<[1], [0], [0], [1], [0, 0, 1, 1], [], []>} : vector<8x128xbf16>, vector<128x128xbf16>, vector<8x128xf32> -> vector<8x128xf32>
    %c3_28 = arith.constant 3 : index
    %c0_29 = arith.constant 0 : index
    %c0_30 = arith.constant 0 : index
    %34 = vector.load %arg6[%c3_28, %c0_29, %c0_30] : memref<4x8x128xf32, #tpu.memory_space<vmem>>, vector<1x8x128xf32>
    %35 = vector.shape_cast %34 : vector<1x8x128xf32> to vector<8x128xf32>
    %36 = vector.shape_cast %33 : vector<8x128xf32> to vector<1x8x128xf32>
    tpu.vector_store %arg6[%c3_28, %c0_29, %c0_30], %36 {strides = array<i32>} : memref<4x8x128xf32, #tpu.memory_space<vmem>>, vector<1x8x128xf32>,
    %37 = arith.mulf %33, %33 : vector<8x128xf32>
    %cst_31 = arith.constant dense<0.000000e+00> : vector<8xf32>
    %38 = vector.multi_reduction <add>, %37, %cst_31 [1] : vector<8x128xf32> to vector<8xf32>
    %39 = vector.shape_cast %38 : vector<8xf32> to vector<8x1xf32>
    %cst_32 = arith.constant 1.000000e-16 : f32
    %40 = vector.broadcast %cst_32 : f32 to vector<8x1xf32>
    %41 = arith.maximumf %12, %40 : vector<8x1xf32>
    %42 = math.sqrt %41 : vector<8x1xf32>
    %cst_33 = arith.constant -5.000000e+00 : f32
    %43 = vector.broadcast %cst_33 : f32 to vector<8x1xf32>
    %44 = arith.mulf %43, %42 : vector<8x1xf32>
    %cst_34 = arith.constant 1.000000e-16 : f32
    %45 = vector.broadcast %cst_34 : f32 to vector<8x1xf32>
    %46 = arith.maximumf %21, %45 : vector<8x1xf32>
    %47 = math.sqrt %46 : vector<8x1xf32>
    %cst_35 = arith.constant -5.000000e+00 : f32
    %48 = vector.broadcast %cst_35 : f32 to vector<8x1xf32>
    %49 = arith.mulf %48, %47 : vector<8x1xf32>
    %cst_36 = arith.constant 1.000000e-16 : f32
    %50 = vector.broadcast %cst_36 : f32 to vector<8x1xf32>
    %51 = arith.maximumf %30, %50 : vector<8x1xf32>
    %52 = math.sqrt %51 : vector<8x1xf32>
    %cst_37 = arith.constant -5.000000e+00 : f32
    %53 = vector.broadcast %cst_37 : f32 to vector<8x1xf32>
    %54 = arith.mulf %53, %52 : vector<8x1xf32>
    %cst_38 = arith.constant 1.000000e-16 : f32
    %55 = vector.broadcast %cst_38 : f32 to vector<8x1xf32>
    %56 = arith.maximumf %39, %55 : vector<8x1xf32>
    %57 = math.sqrt %56 : vector<8x1xf32>
    %cst_39 = arith.constant -5.000000e+00 : f32
    %58 = vector.broadcast %cst_39 : f32 to vector<8x1xf32>
    %59 = arith.mulf %58, %57 : vector<8x1xf32>
    %60 = arith.maximumf %44, %49 : vector<8x1xf32>
    %61 = arith.maximumf %60, %54 : vector<8x1xf32>
    %62 = arith.maximumf %61, %59 : vector<8x1xf32>
    %63 = arith.subf %44, %62 : vector<8x1xf32>
    %64 = math.exp %63 : vector<8x1xf32>
    %65 = arith.subf %49, %62 : vector<8x1xf32>
    %66 = math.exp %65 : vector<8x1xf32>
    %67 = arith.subf %54, %62 : vector<8x1xf32>
    %68 = math.exp %67 : vector<8x1xf32>
    %69 = arith.subf %59, %62 : vector<8x1xf32>
    %70 = math.exp %69 : vector<8x1xf32>
    %71 = arith.addf %64, %66 : vector<8x1xf32>
    %72 = arith.addf %71, %68 : vector<8x1xf32>
    %73 = arith.addf %72, %70 : vector<8x1xf32>
    %74 = tpu.reciprocal %73 {approx = true} : vector<8x1xf32> -> vector<8x1xf32>
    %c0_40 = arith.constant 0 : index
    %75 = memref.load %arg4[%c0_40] : memref<4xf32, #tpu.memory_space<smem>>
    %76 = vector.broadcast %75 : f32 to vector<8x1xf32>
    %77 = arith.mulf %76, %64 : vector<8x1xf32>
    %78 = arith.mulf %77, %74 : vector<8x1xf32>
    %c0_41 = arith.constant 0 : index
    %c0_42 = arith.constant 0 : index
    %c0_43 = arith.constant 0 : index
    %79 = vector.load %arg6[%c0_41, %c0_42, %c0_43] : memref<4x8x128xf32, #tpu.memory_space<vmem>>, vector<1x8x128xf32>
    %80 = vector.shape_cast %79 : vector<1x8x128xf32> to vector<8x128xf32>
    %81 = vector.broadcast %78 : vector<8x1xf32> to vector<8x128xf32>
    %82 = arith.mulf %81, %80 : vector<8x128xf32>
    %c1_44 = arith.constant 1 : index
    %83 = memref.load %arg4[%c1_44] : memref<4xf32, #tpu.memory_space<smem>>
    %84 = vector.broadcast %83 : f32 to vector<8x1xf32>
    %85 = arith.mulf %84, %66 : vector<8x1xf32>
    %86 = arith.mulf %85, %74 : vector<8x1xf32>
    %c1_45 = arith.constant 1 : index
    %c0_46 = arith.constant 0 : index
    %c0_47 = arith.constant 0 : index
    %87 = vector.load %arg6[%c1_45, %c0_46, %c0_47] : memref<4x8x128xf32, #tpu.memory_space<vmem>>, vector<1x8x128xf32>
    %88 = vector.shape_cast %87 : vector<1x8x128xf32> to vector<8x128xf32>
    %89 = vector.broadcast %86 : vector<8x1xf32> to vector<8x128xf32>
    %90 = arith.mulf %89, %88 : vector<8x128xf32>
    %91 = arith.addf %82, %90 : vector<8x128xf32>
    %c2_48 = arith.constant 2 : index
    %92 = memref.load %arg4[%c2_48] : memref<4xf32, #tpu.memory_space<smem>>
    %93 = vector.broadcast %92 : f32 to vector<8x1xf32>
    %94 = arith.mulf %93, %68 : vector<8x1xf32>
    %95 = arith.mulf %94, %74 : vector<8x1xf32>
    %c2_49 = arith.constant 2 : index
    %c0_50 = arith.constant 0 : index
    %c0_51 = arith.constant 0 : index
    %96 = vector.load %arg6[%c2_49, %c0_50, %c0_51] : memref<4x8x128xf32, #tpu.memory_space<vmem>>, vector<1x8x128xf32>
    %97 = vector.shape_cast %96 : vector<1x8x128xf32> to vector<8x128xf32>
    %98 = vector.broadcast %95 : vector<8x1xf32> to vector<8x128xf32>
    %99 = arith.mulf %98, %97 : vector<8x128xf32>
    %100 = arith.addf %91, %99 : vector<8x128xf32>
    %c3_52 = arith.constant 3 : index
    %101 = memref.load %arg4[%c3_52] : memref<4xf32, #tpu.memory_space<smem>>
    %102 = vector.broadcast %101 : f32 to vector<8x1xf32>
    %103 = arith.mulf %102, %70 : vector<8x1xf32>
    %104 = arith.mulf %103, %74 : vector<8x1xf32>
    %c3_53 = arith.constant 3 : index
    %c0_54 = arith.constant 0 : index
    %c0_55 = arith.constant 0 : index
    %105 = vector.load %arg6[%c3_53, %c0_54, %c0_55] : memref<4x8x128xf32, #tpu.memory_space<vmem>>, vector<1x8x128xf32>
    %106 = vector.shape_cast %105 : vector<1x8x128xf32> to vector<8x128xf32>
    %107 = vector.broadcast %104 : vector<8x1xf32> to vector<8x128xf32>
    %108 = arith.mulf %107, %106 : vector<8x128xf32>
    %109 = arith.addf %100, %108 : vector<8x128xf32>
    %110 = arith.addf %0, %3 : vector<8x128xf32>
    %111 = arith.subf %110, %109 : vector<8x128xf32>
    %112 = arith.mulf %111, %111 : vector<8x128xf32>
    %cst_56 = arith.constant dense<0.000000e+00> : vector<8xf32>
    %113 = vector.multi_reduction <add>, %112, %cst_56 [1] : vector<8x128xf32> to vector<8xf32>
    %114 = vector.shape_cast %113 : vector<8xf32> to vector<8x1xf32>
    %cst_57 = arith.constant 1.000000e-24 : f32
    %115 = vector.broadcast %cst_57 : f32 to vector<8x1xf32>
    %116 = arith.maximumf %114, %115 : vector<8x1xf32>
    %117 = math.rsqrt %116 : vector<8x1xf32>
    %118 = vector.broadcast %117 : vector<8x1xf32> to vector<8x128xf32>
    %119 = arith.mulf %111, %118 : vector<8x128xf32>
    %c0_58 = arith.constant 0 : index
    %c0_59 = arith.constant 0 : index
    %120 = vector.load %arg5[%c0_58, %c0_59] : memref<8x128xf32, #tpu.memory_space<vmem>>, vector<8x128xf32>
    tpu.vector_store %arg5[%c0_58, %c0_59], %119 {strides = array<i32>} : memref<8x128xf32, #tpu.memory_space<vmem>>, vector<8x128xf32>,
    return
  }
  func.func @transform_0(%arg0: i32) -> (i32, i32) {
    %c0_i32 = arith.constant 0 : i32
    %c0_i32_0 = arith.constant 0 : i32
    return %arg0, %c0_i32 : i32, i32
  }
  func.func @transform_1(%arg0: i32) -> (i32, i32) {
    %c0_i32 = arith.constant 0 : i32
    %c0_i32_0 = arith.constant 0 : i32
    %c0_i32_1 = arith.constant 0 : i32
    return %c0_i32, %c0_i32_0 : i32, i32
  }
  func.func @transform_2(%arg0: i32) -> (i32, i32, i32) {
    %c0_i32 = arith.constant 0 : i32
    %c0_i32_0 = arith.constant 0 : i32
    %c0_i32_1 = arith.constant 0 : i32
    %c0_i32_2 = arith.constant 0 : i32
    return %c0_i32, %c0_i32_0, %c0_i32_1 : i32, i32, i32
  }
  func.func @transform_3(%arg0: i32) -> i32 {
    %c0_i32 = arith.constant 0 : i32
    %c0_i32_0 = arith.constant 0 : i32
    return %c0_i32 : i32
  }
  func.func @transform_4(%arg0: i32) -> (i32, i32) {
    %c0_i32 = arith.constant 0 : i32
    %c0_i32_0 = arith.constant 0 : i32
    return %arg0, %c0_i32 : i32, i32
  }
}

</mosaic_0001>

<llo_original>
// kernel: tpu_custom_call.1
$region0: #{tpu_custom_call.1}
  #allocation0 [shape = 'u32[]', space=smem, size = 0x4, offset = 0x4, fixed_abs, tag = 'smem constant byte address 0x4 - core index']
  #allocation1 [shape = 'u32[144,128]{1,0:T(1,128)}', space=vmem, size = 0x12000, scoped, tag = 'internal scratch']
  #allocation2 [shape = 'f32[4,8,128]{2,1,0:T(8,128)}', space=vmem, size = 0x4000, scoped, tag = 'scratch operand']
  %s0 = inlined_call_operand.hbm [shape: f32[32,128], index: 0, kind: input, shape index: {}]
  %s1 = inlined_call_operand.hbm [shape: bf16[128,128], index: 1, kind: input, shape index: {}]
  %s2 = inlined_call_operand.hbm [shape: bf16[4,128,128], index: 2, kind: input, shape index: {}]
  %s3 = inlined_call_operand.vmem [shape: f32[4], index: 3, kind: input, shape index: {}]
  %s4 = inlined_call_operand.hbm [shape: f32[32,128], index: 4, kind: output, shape index: {}]
  %s5 = sld [smem:[#allocation0]]
  $region65: #{tpu_custom_call.1} parent=0
    _
  %s7 = ssub.s32 1, %s5
  %s8 = scalar_select 0, %s7, %s5
  $region1: #{tpu_custom_call.1} parent=0
    #allocation3 [shape = 'u8[8192]{0}', space=vmem, size = 0x2000, scoped, tag = 'input window, operand 0']
    #allocation4 [shape = 's32[2]{0}', space=sflag, size = 0x8, scoped, tag = 'scoped memory for tpu_custom_call.1']
    #allocation5 [shape = 's32[2]{0}', space=sflag, size = 0x8, scoped, tag = 'scoped memory for tpu_custom_call.1']
    #allocation6 [shape = 's32[2]{0}', space=sflag, size = 0x8, scoped, tag = 'scoped memory for tpu_custom_call.1']
    #allocation7 [shape = 'u8[32768]{0}', space=vmem, size = 0x8000, scoped, tag = 'input window, operand 1, single buffered']
    #allocation8 [shape = 's32[1]{0}', space=sflag, size = 0x4, scoped, tag = 'scoped memory for tpu_custom_call.1']
    #allocation9 [shape = 'u8[131072]{0}', space=vmem, size = 0x20000, scoped, tag = 'input window, operand 2, single buffered']
    #allocation10 [shape = 'u8[512]{0}', space=smem, size = 0x200, scoped, tag = 'input window, operand 3, single buffered']
    #allocation11 [shape = 'u8[8192]{0}', space=vmem, size = 0x2000, scoped, tag = 'output window, operand 0']
    %9 = vsyncpa [#allocation4], 0
    %s10 = scalar_lea.sflag [#allocation4], 1
    %11 = vsyncpa %s10, 0
    %12 = vsyncpa [#allocation8], 0
    %13 = vsyncpa [#allocation6], 0
    %14 = vsyncpa [#allocation5], 0
    %s15 = scalar_lea.sflag [#allocation5], 1
    %16 = vsyncpa %s15, 0
    loop: start=0, step=1, limit=6
    $region2: #{tpu_custom_call.1} parent=1 // loop_pre_header
      _
    $region3: #{tpu_custom_call.1} parent=1 // loop_header
      %s18 = sphi 0, %s22
      %p19 = scmp.ge.s32.totalorder %s18, 6
      %s28 = sphi 0, %s30
      %s31 = sphi 0, %s28
      %s32 = sphi 0, %s31
      %s48 = sphi 0, %s32
      %s52 = sphi 0, %s52
      %s54 = sphi 0, %s52
      %s55 = sphi 0, %s54
      %s69 = sphi 0, %s55
      %s73 = sphi 0, %s73
      %s75 = sphi 0, %s73
      %s76 = sphi 0, %s75
      %s90 = sphi 0, %s76
      %s94 = sphi 0, %s94
      %s96 = sphi 0, %s94
      %s97 = sphi 0, %s96
      %s111 = sphi 0, %s97
      %s117 = sphi 0, %s119
      %s120 = sphi 0, %s117
      %s121 = sphi 0, %s120
      %s137 = sphi 0, %s121
    $region4: #{tpu_custom_call.1} parent=1 // loop_header_branch
      %21 = sbr.rel (%p19) target = $region8
    $region5: #{tpu_custom_call.1} parent=1 // loop_body
      %s23 = ssub.s32 %s18, 1
      %s24 = ssub.s32 %s18, 2
      %s25 = sadd.s32 %s18, 1
      %s26 = ssub.s32 %s18, %s25
      %p27 = scmp.eq.s32.totalorder %s26, 0
      %s29 = sadd.s32 %s28, 1
      %s30 = scalar_select %p27, %s28, %s29
      %p33 = pneg %p27
      %p34 = scmp.eq.s32.totalorder %s18, 3
      %p35 = por %p33, %p34
      %p36 = scmp.ne.s32.totalorder %s28, %s31
      %p37 = scmp.eq.s32.totalorder %s18, 0
      %p38 = por %p36, %p37
      %p39 = scmp.ne.s32.totalorder %s28, %s31
      %p40 = scmp.eq.s32.totalorder %s23, 3
      %p41 = por %p39, %p40
      %p42 = scmp.ne.s32.totalorder %s31, %s32
      %p43 = scmp.eq.s32.totalorder %s23, 0
      %p44 = por %p42, %p43
      %p45 = scmp.ne.s32.totalorder %s31, %s32
      %p46 = scmp.eq.s32.totalorder %s24, 3
      %p47 = por %p45, %p46
      %p49 = scmp.ne.s32.totalorder %s32, %s48
      %p50 = scmp.eq.s32.totalorder %s24, 0
      %p51 = por %p49, %p50
      %s53 = sadd.s32 %s52, 1
      %p56 = scmp.eq.s32.totalorder %s18, 3
      %p57 = scmp.ne.s32.totalorder %s52, %s54
      %p58 = scmp.eq.s32.totalorder %s18, 0
      %p59 = por %p57, %p58
      %p60 = scmp.ne.s32.totalorder %s52, %s54
      %p61 = scmp.eq.s32.totalorder %s23, 3
      %p62 = por %p60, %p61
      %p63 = scmp.ne.s32.totalorder %s54, %s55
      %p64 = scmp.eq.s32.totalorder %s23, 0
      %p65 = por %p63, %p64
      %p66 = scmp.ne.s32.totalorder %s54, %s55
      %p67 = scmp.eq.s32.totalorder %s24, 3
      %p68 = por %p66, %p67
      %p70 = scmp.ne.s32.totalorder %s55, %s69
      %p71 = scmp.eq.s32.totalorder %s24, 0
      %p72 = por %p70, %p71
      %s74 = sadd.s32 %s73, 1
      %p77 = scmp.eq.s32.totalorder %s18, 3
      %p78 = scmp.ne.s32.totalorder %s73, %s75
      %p79 = scmp.eq.s32.totalorder %s18, 0
      %p80 = por %p78, %p79
      %p81 = scmp.ne.s32.totalorder %s73, %s75
      %p82 = scmp.eq.s32.totalorder %s23, 3
      %p83 = por %p81, %p82
      %p84 = scmp.ne.s32.totalorder %s75, %s76
      %p85 = scmp.eq.s32.totalorder %s23, 0
      %p86 = por %p84, %p85
      %p87 = scmp.ne.s32.totalorder %s75, %s76
      %p88 = scmp.eq.s32.totalorder %s24, 3
      %p89 = por %p87, %p88
      %p91 = scmp.ne.s32.totalorder %s76, %s90
      %p92 = scmp.eq.s32.totalorder %s24, 0
      %p93 = por %p91, %p92
      %s95 = sadd.s32 %s94, 1
      %p98 = scmp.eq.s32.totalorder %s18, 3
      %p99 = scmp.ne.s32.totalorder %s94, %s96
      %p100 = scmp.eq.s32.totalorder %s18, 0
      %p101 = por %p99, %p100
      %p102 = scmp.ne.s32.totalorder %s94, %s96
      %p103 = scmp.eq.s32.totalorder %s23, 3
      %p104 = por %p102, %p103
      %p105 = scmp.ne.s32.totalorder %s96, %s97
      %p106 = scmp.eq.s32.totalorder %s23, 0
      %p107 = por %p105, %p106
      %p108 = scmp.ne.s32.totalorder %s96, %s97
      %p109 = scmp.eq.s32.totalorder %s24, 3
      %p110 = por %p108, %p109
      %p112 = scmp.ne.s32.totalorder %s97, %s111
      %p113 = scmp.eq.s32.totalorder %s24, 0
      %p114 = por %p112, %p113
      %s115 = ssub.s32 %s18, %s25
      %p116 = scmp.eq.s32.totalorder %s115, 0
      %s118 = sadd.s32 %s117, 1
      %s119 = scalar_select %p116, %s117, %s118
      %p122 = pneg %p116
      %p123 = scmp.eq.s32.totalorder %s18, 3
      %p124 = por %p122, %p123
      %p125 = scmp.ne.s32.totalorder %s117, %s120
      %p126 = scmp.eq.s32.totalorder %s18, 0
      %p127 = por %p125, %p126
      %p128 = scmp.ne.s32.totalorder %s117, %s120
      %p129 = scmp.eq.s32.totalorder %s23, 3
      %p130 = por %p128, %p129
      %p131 = scmp.ne.s32.totalorder %s120, %s121
      %p132 = scmp.eq.s32.totalorder %s23, 0
      %p133 = por %p131, %p132
      %p134 = scmp.ne.s32.totalorder %s120, %s121
      %p135 = scmp.eq.s32.totalorder %s24, 3
      %p136 = por %p134, %p135
      %p138 = scmp.ne.s32.totalorder %s121, %s137
      %p139 = scmp.eq.s32.totalorder %s24, 0
      %p140 = por %p138, %p139
      %p141 = scmp.le.s32.totalorder 1, %s18
      %p142 = scmp.lt.s32.totalorder %s18, 5
      %p143 = pnand %p141, %p142
      %p144 = pneg %p143
      // Predicated region
      $region9: #{tpu_custom_call.1} parent=5 // pred_check
        _
      $region10: #{tpu_custom_call.1} parent=5 // pred_check_branch
        %146 = sbr.rel (%p143) target = $region12
      $region11: #{tpu_custom_call.1} parent=5 // pred_region
        %s147 = ssub.s32 %s18, 1
        // Predicated region
        $region13: #{tpu_custom_call.1} parent=11 // pred_check
          %p148 = pneg %p65
        $region14: #{tpu_custom_call.1} parent=11 // pred_check_branch
          %150 = sbr.rel (%p148) target = $region16
        $region15: #{tpu_custom_call.1} parent=11 // pred_region
          %s152 = ssub.s32 1024, 1024
          %153 = vsyncadd [#allocation8], %s152
          %s154 = sshll.u32 [#allocation7], 4
          %s155 = int_to_ptr.vmem [resolvable:$true] %s154
          %160 = dma.hbm_to_vmem [thread:$0]  %s1, 1024, %s155, [#allocation8], 64, 64, 4
        $region16: #{tpu_custom_call.1} parent=11 // pred_fallthru
          _
        // Predicated region
        $region17: #{tpu_custom_call.1} parent=11 // pred_check
          %p161 = pneg %p86
        $region18: #{tpu_custom_call.1} parent=11 // pred_check_branch
          %163 = sbr.rel (%p161) target = $region20
        $region19: #{tpu_custom_call.1} parent=11 // pred_region
          %s165 = ssub.s32 4096, 4096
          %166 = vsyncadd [#allocation8], %s165
          %s167 = sshll.u32 [#allocation9], 4
          %s168 = int_to_ptr.vmem [resolvable:$true] %s167
          %173 = dma.hbm_to_vmem [thread:$0]  %s2, 4096, %s168, [#allocation8], 64, 64, 4
        $region20: #{tpu_custom_call.1} parent=11 // pred_fallthru
          _
        // Predicated region
        $region21: #{tpu_custom_call.1} parent=11 // pred_check
          %p174 = pneg %p107
        $region22: #{tpu_custom_call.1} parent=11 // pred_check_branch
          %176 = sbr.rel (%p174) target = $region24
        $region23: #{tpu_custom_call.1} parent=11 // pred_region
          %s178 = ssub.s32 16, 16
          %179 = vsyncadd [#allocation6], %s178
          %s181 = sshll.u32 %s3, 4
          %s182 = int_to_ptr.vmem [resolvable:$true] %s181
          %184 = dma.vmem_to_smem %s182, 16, [#allocation10], [#allocation6]
        $region24: #{tpu_custom_call.1} parent=11 // pred_fallthru
          _
      $region12: #{tpu_custom_call.1} parent=5 // pred_fallthru
        _
      %p185 = scmp.lt.s32.totalorder %s18, 4
      // Predicated region
      $region25: #{tpu_custom_call.1} parent=5 // pred_check
        %p186 = pneg %p185
      $region26: #{tpu_custom_call.1} parent=5 // pred_check_branch
        %188 = sbr.rel (%p186) target = $region28
      $region27: #{tpu_custom_call.1} parent=5 // pred_region
        // Predicated region
        $region29: #{tpu_custom_call.1} parent=27 // pred_check
          %p189 = pneg %p38
        $region30: #{tpu_custom_call.1} parent=27 // pred_check_branch
          %191 = sbr.rel (%p189) target = $region32
        $region31: #{tpu_custom_call.1} parent=27 // pred_region
          %s192 = sand.u32 %s28, 1
          %s193 = scalar_lea.sflag [#allocation4], %s192
          %s194 = sand.u32 %s28, 1
          %s195 = smul.addr %s194, 8
          %s196 = scalar_lea.vmem [#allocation3], %s195
          %s198 = ssub.s32 128, 128
          %199 = vsyncadd %s193, %s198
          %s200 = smul.addr %s18, 128
          %s201 = scalar_lea.hbm %s0, %s200
          %s203 = sshll.u32 %s196, 4
          %s204 = int_to_ptr.vmem [resolvable:$true] %s203
          %206 = dma.hbm_to_vmem [thread:$0]  %s201, 128, %s204, %s193
        $region32: #{tpu_custom_call.1} parent=27 // pred_fallthru
          _
      $region28: #{tpu_custom_call.1} parent=5 // pred_fallthru
        _
      %p207 = scmp.le.s32.totalorder 1, %s18
      %p208 = scmp.lt.s32.totalorder %s18, 5
      %p209 = pnand %p207, %p208
      %p210 = pneg %p209
      // Predicated region
      $region33: #{tpu_custom_call.1} parent=5 // pred_check
        _
      $region34: #{tpu_custom_call.1} parent=5 // pred_check_branch
        %212 = sbr.rel (%p209) target = $region36
      $region35: #{tpu_custom_call.1} parent=5 // pred_region
        %s213 = ssub.s32 %s18, 1
        %s214 = sand.u32 %s31, 1
        %s215 = scalar_lea.sflag [#allocation4], %s214
        %s216 = sand.u32 %s31, 1
        %s217 = smul.addr %s216, 8
        %s218 = scalar_lea.vmem [#allocation3], %s217
        // Predicated region
        $region37: #{tpu_custom_call.1} parent=35 // pred_check
          %p219 = pneg %p44
        $region38: #{tpu_custom_call.1} parent=35 // pred_check_branch
          %221 = sbr.rel (%p219) target = $region40
        $region39: #{tpu_custom_call.1} parent=35 // pred_region
          %222 = dma.done %s215, 128
        $region40: #{tpu_custom_call.1} parent=35 // pred_fallthru
          _
        // Predicated region
        $region41: #{tpu_custom_call.1} parent=35 // pred_check
          %p223 = pneg %p65
        $region42: #{tpu_custom_call.1} parent=35 // pred_check_branch
          %225 = sbr.rel (%p223) target = $region44
        $region43: #{tpu_custom_call.1} parent=35 // pred_region
          %226 = dma.done [#allocation8], 1024
        $region44: #{tpu_custom_call.1} parent=35 // pred_fallthru
          _
        // Predicated region
        $region45: #{tpu_custom_call.1} parent=35 // pred_check
          %p227 = pneg %p86
        $region46: #{tpu_custom_call.1} parent=35 // pred_check_branch
          %229 = sbr.rel (%p227) target = $region48
        $region47: #{tpu_custom_call.1} parent=35 // pred_region
          %230 = dma.done [#allocation8], 4096
        $region48: #{tpu_custom_call.1} parent=35 // pred_fallthru
          _
        // Predicated region
        $region49: #{tpu_custom_call.1} parent=35 // pred_check
          %p231 = pneg %p107
        $region50: #{tpu_custom_call.1} parent=35 // pred_check_branch
          %233 = sbr.rel (%p231) target = $region52
        $region51: #{tpu_custom_call.1} parent=35 // pred_region
          %234 = dma.done [#allocation6], 16
        $region52: #{tpu_custom_call.1} parent=35 // pred_fallthru
          _
        %235 = sfence
        %s236 = sand.u32 %s31, 1
        %s237 = scalar_lea.sflag [#allocation4], %s236
        %s238 = sand.u32 %s31, 1
        %s239 = smul.addr %s238, 8
        %s240 = scalar_lea.vmem [#allocation3], %s239
        %p241 = pneg %p44
        %p242 = pneg %p41
        %p243 = pneg %p65
        %p244 = pneg %p62
        %p245 = pneg %p86
        %p246 = pneg %p83
        %p247 = pneg %p107
        %p248 = pneg %p104
        %p249 = pneg %p133
        %p250 = pneg %p130
        %s251 = sand.u32 %s120, 1
        %s252 = scalar_lea.sflag [#allocation5], %s251
        %s253 = sand.u32 %s120, 1
        %s254 = smul.addr %s253, 8
        %s255 = scalar_lea.vmem [#allocation11], %s254
        %v257 = vld [vmem:[%s218] sm:$0xff]
        %v258 = vpack.c.bf16 %v257, %v257
        %v259 = vld [vmem:[#allocation7] sm:$0xf]
        %v260 = vld [vmem:[#allocation7 + $0x4] sm:$0xf]
        %v261 = vld [vmem:[#allocation7 + $0x8] sm:$0xf]
        %v262 = vld [vmem:[#allocation7 + $0xc] sm:$0xf]
        %v263 = vld [vmem:[#allocation7 + $0x10] sm:$0xf]
        %v264 = vld [vmem:[#allocation7 + $0x14] sm:$0xf]
        %v265 = vld [vmem:[#allocation7 + $0x18] sm:$0xf]
        %v266 = vld [vmem:[#allocation7 + $0x1c] sm:$0xf]
        %v267 = vld [vmem:[#allocation7 + $0x20] sm:$0xf]
        %v268 = vld [vmem:[#allocation7 + $0x24] sm:$0xf]
        %v269 = vld [vmem:[#allocation7 + $0x28] sm:$0xf]
        %v270 = vld [vmem:[#allocation7 + $0x2c] sm:$0xf]
        %v271 = vld [vmem:[#allocation7 + $0x30] sm:$0xf]
        %v272 = vld [vmem:[#allocation7 + $0x34] sm:$0xf]
        %v273 = vld [vmem:[#allocation7 + $0x38] sm:$0xf]
        %v274 = vld [vmem:[#allocation7 + $0x3c] sm:$0xf]
        %v291 = vunpack.c.l.b16 %v259
        %v292 = vunpack.c.l.b16 %v260
        %v293 = vunpack.c.l.b16 %v261
        %v294 = vunpack.c.l.b16 %v262
        %v295 = vunpack.c.l.b16 %v263
        %v296 = vunpack.c.l.b16 %v264
        %v297 = vunpack.c.l.b16 %v265
        %v298 = vunpack.c.l.b16 %v266
        %v299 = vunpack.c.l.b16 %v267
        %v300 = vunpack.c.l.b16 %v268
        %v301 = vunpack.c.l.b16 %v269
        %v302 = vunpack.c.l.b16 %v270
        %v303 = vunpack.c.l.b16 %v271
        %v304 = vunpack.c.l.b16 %v272
        %v305 = vunpack.c.l.b16 %v273
        %v306 = vunpack.c.l.b16 %v274
        %v307 = vpack.c.b16 %v292, %v291
        %v308 = vpack.c.b16 %v294, %v293
        %v309 = vpack.c.b16 %v296, %v295
        %v310 = vpack.c.b16 %v298, %v297
        %v311 = vpack.c.b16 %v300, %v299
        %v312 = vpack.c.b16 %v302, %v301
        %v313 = vpack.c.b16 %v304, %v303
        %v314 = vpack.c.b16 %v306, %v305
        %323 = vmatprep.subr.bf16.mxu0 0
        %324 = vmatpush1.bf16.msra.mxu0 %v307
        %325 = vmatprep.subr.bf16.mxu0 0
        %326 = vmatpush1.bf16.msra.mxu0 %v308
        %327 = vmatprep.subr.bf16.mxu0 0
        %328 = vmatpush1.bf16.msra.mxu0 %v309
        %329 = vmatprep.subr.bf16.mxu0 0
        %330 = vmatpush1.bf16.msra.mxu0 %v310
        %331 = vmatprep.subr.bf16.mxu0 0
        %332 = vmatpush1.bf16.msra.mxu0 %v311
        %333 = vmatprep.subr.bf16.mxu0 0
        %334 = vmatpush1.bf16.msra.mxu0 %v312
        %335 = vmatprep.subr.bf16.mxu0 0
        %336 = vmatpush1.bf16.msra.mxu0 %v313
        %337 = vmatprep.subr.bf16.mxu0 0
        %338 = vmatpush1.bf16.msra.mxu0 %v314
        %339 = vmatprep.subr.bf16.mxu0 0
        %340 = vmatpush1.bf16.msra.mxu0 0
        %341 = vmatprep.subr.bf16.mxu0 0
        %342 = vmatpush1.bf16.msra.mxu0 0
        %343 = vmatprep.subr.bf16.mxu0 0
        %344 = vmatpush1.bf16.msra.mxu0 0
        %345 = vmatprep.subr.bf16.mxu0 0
        %346 = vmatpush1.bf16.msra.mxu0 0
        %347 = vmatprep.subr.bf16.mxu0 0
        %348 = vmatpush1.bf16.msra.mxu0 0
        %349 = vmatprep.subr.bf16.mxu0 0
        %350 = vmatpush1.bf16.msra.mxu0 0
        %351 = vmatprep.subr.bf16.mxu0 0
        %352 = vmatpush1.bf16.msra.mxu0 0
        %353 = vmatprep.subr.bf16.mxu0 0
        %354 = vmatpush1.bf16.msra.mxu0 0
        %355 = vmatprep.mubr.bf16.mxu0 0
        %356 = vmatmul.mubr.bf16.gmra.mrb[0].mxu0 %v258
        %v357 = vpop.f32.mrb[0].mxu0
        %v358 = vadd.f32 0.0, %v357
        %v359 = vpop.f32.mrb[0].mxu0
        %v360 = vpop.f32.mrb[0].mxu0
        %v361 = vpop.f32.mrb[0].mxu0
        %362 = vdwg.mxu0
        %v363 = vld [vmem:[#allocation9] sm:$0xf]
        %v364 = vld [vmem:[#allocation9 + $0x4] sm:$0xf]
        %v365 = vld [vmem:[#allocation9 + $0x8] sm:$0xf]
        %v366 = vld [vmem:[#allocation9 + $0xc] sm:$0xf]
        %v367 = vld [vmem:[#allocation9 + $0x10] sm:$0xf]
        %v368 = vld [vmem:[#allocation9 + $0x14] sm:$0xf]
        %v369 = vld [vmem:[#allocation9 + $0x18] sm:$0xf]
        %v370 = vld [vmem:[#allocation9 + $0x1c] sm:$0xf]
        %v371 = vld [vmem:[#allocation9 + $0x20] sm:$0xf]
        %v372 = vld [vmem:[#allocation9 + $0x24] sm:$0xf]
        %v373 = vld [vmem:[#allocation9 + $0x28] sm:$0xf]
        %v374 = vld [vmem:[#allocation9 + $0x2c] sm:$0xf]
        %v375 = vld [vmem:[#allocation9 + $0x30] sm:$0xf]
        %v376 = vld [vmem:[#allocation9 + $0x34] sm:$0xf]
        %v377 = vld [vmem:[#allocation9 + $0x38] sm:$0xf]
        %v378 = vld [vmem:[#allocation9 + $0x3c] sm:$0xf]
        %v395 = vunpack.c.l.b16 %v363
        %v396 = vunpack.c.l.b16 %v364
        %v397 = vunpack.c.l.b16 %v365
        %v398 = vunpack.c.l.b16 %v366
        %v399 = vunpack.c.l.b16 %v367
        %v400 = vunpack.c.l.b16 %v368
        %v401 = vunpack.c.l.b16 %v369
        %v402 = vunpack.c.l.b16 %v370
        %v403 = vunpack.c.l.b16 %v371
        %v404 = vunpack.c.l.b16 %v372
        %v405 = vunpack.c.l.b16 %v373
        %v406 = vunpack.c.l.b16 %v374
        %v407 = vunpack.c.l.b16 %v375
        %v408 = vunpack.c.l.b16 %v376
        %v409 = vunpack.c.l.b16 %v377
        %v410 = vunpack.c.l.b16 %v378
        %v411 = vpack.c.b16 %v396, %v395
        %v412 = vpack.c.b16 %v398, %v397
        %v413 = vpack.c.b16 %v400, %v399
        %v414 = vpack.c.b16 %v402, %v401
        %v415 = vpack.c.b16 %v404, %v403
        %v416 = vpack.c.b16 %v406, %v405
        %v417 = vpack.c.b16 %v408, %v407
        %v418 = vpack.c.b16 %v410, %v409
        %427 = vmatprep.subr.bf16.mxu0 0
        %428 = vmatpush1.bf16.msra.mxu0 %v411
        %429 = vmatprep.subr.bf16.mxu0 0
        %430 = vmatpush1.bf16.msra.mxu0 %v412
        %431 = vmatprep.subr.bf16.mxu0 0
        %432 = vmatpush1.bf16.msra.mxu0 %v413
        %433 = vmatprep.subr.bf16.mxu0 0
        %434 = vmatpush1.bf16.msra.mxu0 %v414
        %435 = vmatprep.subr.bf16.mxu0 0
        %436 = vmatpush1.bf16.msra.mxu0 %v415
        %437 = vmatprep.subr.bf16.mxu0 0
        %438 = vmatpush1.bf16.msra.mxu0 %v416
        %439 = vmatprep.subr.bf16.mxu0 0
        %440 = vmatpush1.bf16.msra.mxu0 %v417
        %441 = vmatprep.subr.bf16.mxu0 0
        %442 = vmatpush1.bf16.msra.mxu0 %v418
        %443 = vmatprep.subr.bf16.mxu0 0
        %444 = vmatpush1.bf16.msra.mxu0 0
        %445 = vmatprep.subr.bf16.mxu0 0
        %446 = vmatpush1.bf16.msra.mxu0 0
        %447 = vmatprep.subr.bf16.mxu0 0
        %448 = vmatpush1.bf16.msra.mxu0 0
        %449 = vmatprep.subr.bf16.mxu0 0
        %450 = vmatpush1.bf16.msra.mxu0 0
        %451 = vmatprep.subr.bf16.mxu0 0
        %452 = vmatpush1.bf16.msra.mxu0 0
        %453 = vmatprep.subr.bf16.mxu0 0
        %454 = vmatpush1.bf16.msra.mxu0 0
        %455 = vmatprep.subr.bf16.mxu0 0
        %456 = vmatpush1.bf16.msra.mxu0 0
        %457 = vmatprep.subr.bf16.mxu0 0
        %458 = vmatpush1.bf16.msra.mxu0 0
        %459 = vmatprep.mubr.bf16.mxu0 0
        %460 = vmatmul.mubr.bf16.gmra.mrb[0].mxu0 %v258
        %v461 = vpop.f32.mrb[0].mxu0
        %v462 = vadd.f32 0.0, %v461
        %v463 = vpop.f32.mrb[0].mxu0
        %v464 = vpop.f32.mrb[0].mxu0
        %v465 = vpop.f32.mrb[0].mxu0
        %466 = vdwg.mxu0
        %467 = vst [vmem:[#allocation2] sm:$0xff] %v462
        %v468 = vmul.f32 %v462, %v462
        %469 = vadd.xlane.f32.xlu0 %v468
        %v470 = vpop.xlane.xlu0 %469
        %s471 = scalar_lea.vmem [#allocation9], 64
        %v472 = vld [vmem:[%s471] sm:$0xf]
        %v473 = vld [vmem:[%s471 + $0x4] sm:$0xf]
        %v474 = vld [vmem:[%s471 + $0x8] sm:$0xf]
        %v475 = vld [vmem:[%s471 + $0xc] sm:$0xf]
        %v476 = vld [vmem:[%s471 + $0x10] sm:$0xf]
        %v477 = vld [vmem:[%s471 + $0x14] sm:$0xf]
        %v478 = vld [vmem:[%s471 + $0x18] sm:$0xf]
        %v479 = vld [vmem:[%s471 + $0x1c] sm:$0xf]
        %v480 = vld [vmem:[%s471 + $0x20] sm:$0xf]
        %v481 = vld [vmem:[%s471 + $0x24] sm:$0xf]
        %v482 = vld [vmem:[%s471 + $0x28] sm:$0xf]
        %v483 = vld [vmem:[%s471 + $0x2c] sm:$0xf]
        %v484 = vld [vmem:[%s471 + $0x30] sm:$0xf]
        %v485 = vld [vmem:[%s471 + $0x34] sm:$0xf]
        %v486 = vld [vmem:[%s471 + $0x38] sm:$0xf]
        %v487 = vld [vmem:[%s471 + $0x3c] sm:$0xf]
        %v504 = vunpack.c.l.b16 %v472
        %v505 = vunpack.c.l.b16 %v473
        %v506 = vunpack.c.l.b16 %v474
        %v507 = vunpack.c.l.b16 %v475
        %v508 = vunpack.c.l.b16 %v476
        %v509 = vunpack.c.l.b16 %v477
        %v510 = vunpack.c.l.b16 %v478
        %v511 = vunpack.c.l.b16 %v479
        %v512 = vunpack.c.l.b16 %v480
        %v513 = vunpack.c.l.b16 %v481
        %v514 = vunpack.c.l.b16 %v482
        %v515 = vunpack.c.l.b16 %v483
        %v516 = vunpack.c.l.b16 %v484
        %v517 = vunpack.c.l.b16 %v485
        %v518 = vunpack.c.l.b16 %v486
        %v519 = vunpack.c.l.b16 %v487
        %v520 = vpack.c.b16 %v505, %v504
        %v521 = vpack.c.b16 %v507, %v506
        %v522 = vpack.c.b16 %v509, %v508
        %v523 = vpack.c.b16 %v511, %v510
        %v524 = vpack.c.b16 %v513, %v512
        %v525 = vpack.c.b16 %v515, %v514
        %v526 = vpack.c.b16 %v517, %v516
        %v527 = vpack.c.b16 %v519, %v518
        %536 = vmatprep.subr.bf16.mxu0 0
        %537 = vmatpush1.bf16.msra.mxu0 %v520
        %538 = vmatprep.subr.bf16.mxu0 0
        %539 = vmatpush1.bf16.msra.mxu0 %v521
        %540 = vmatprep.subr.bf16.mxu0 0
        %541 = vmatpush1.bf16.msra.mxu0 %v522
        %542 = vmatprep.subr.bf16.mxu0 0
        %543 = vmatpush1.bf16.msra.mxu0 %v523
        %544 = vmatprep.subr.bf16.mxu0 0
        %545 = vmatpush1.bf16.msra.mxu0 %v524
        %546 = vmatprep.subr.bf16.mxu0 0
        %547 = vmatpush1.bf16.msra.mxu0 %v525
        %548 = vmatprep.subr.bf16.mxu0 0
        %549 = vmatpush1.bf16.msra.mxu0 %v526
        %550 = vmatprep.subr.bf16.mxu0 0
        %551 = vmatpush1.bf16.msra.mxu0 %v527
        %552 = vmatprep.subr.bf16.mxu0 0
        %553 = vmatpush1.bf16.msra.mxu0 0
        %554 = vmatprep.subr.bf16.mxu0 0
        %555 = vmatpush1.bf16.msra.mxu0 0
        %556 = vmatprep.subr.bf16.mxu0 0
        %557 = vmatpush1.bf16.msra.mxu0 0
        %558 = vmatprep.subr.bf16.mxu0 0
        %559 = vmatpush1.bf16.msra.mxu0 0
        %560 = vmatprep.subr.bf16.mxu0 0
        %561 = vmatpush1.bf16.msra.mxu0 0
        %562 = vmatprep.subr.bf16.mxu0 0
        %563 = vmatpush1.bf16.msra.mxu0 0
        %564 = vmatprep.subr.bf16.mxu0 0
        %565 = vmatpush1.bf16.msra.mxu0 0
        %566 = vmatprep.subr.bf16.mxu0 0
        %567 = vmatpush1.bf16.msra.mxu0 0
        %568 = vmatprep.mubr.bf16.mxu0 0
        %569 = vmatmul.mubr.bf16.gmra.mrb[0].mxu0 %v258
        %v570 = vpop.f32.mrb[0].mxu0
        %v571 = vadd.f32 0.0, %v570
        %v572 = vpop.f32.mrb[0].mxu0
        %v573 = vpop.f32.mrb[0].mxu0
        %v574 = vpop.f32.mrb[0].mxu0
        %575 = vdwg.mxu0
        %s576 = scalar_lea.vmem [#allocation2], 8
        %577 = vst [vmem:[%s576] sm:$0xff] %v571
        %v578 = vmul.f32 %v571, %v571
        %579 = vadd.xlane.f32.xlu0 %v578
        %v580 = vpop.xlane.xlu0 %579
        %s581 = scalar_lea.vmem [#allocation9], 128
        %v582 = vld [vmem:[%s581] sm:$0xf]
        %v583 = vld [vmem:[%s581 + $0x4] sm:$0xf]
        %v584 = vld [vmem:[%s581 + $0x8] sm:$0xf]
        %v585 = vld [vmem:[%s581 + $0xc] sm:$0xf]
        %v586 = vld [vmem:[%s581 + $0x10] sm:$0xf]
        %v587 = vld [vmem:[%s581 + $0x14] sm:$0xf]
        %v588 = vld [vmem:[%s581 + $0x18] sm:$0xf]
        %v589 = vld [vmem:[%s581 + $0x1c] sm:$0xf]
        %v590 = vld [vmem:[%s581 + $0x20] sm:$0xf]
        %v591 = vld [vmem:[%s581 + $0x24] sm:$0xf]
        %v592 = vld [vmem:[%s581 + $0x28] sm:$0xf]
        %v593 = vld [vmem:[%s581 + $0x2c] sm:$0xf]
        %v594 = vld [vmem:[%s581 + $0x30] sm:$0xf]
        %v595 = vld [vmem:[%s581 + $0x34] sm:$0xf]
        %v596 = vld [vmem:[%s581 + $0x38] sm:$0xf]
        %v597 = vld [vmem:[%s581 + $0x3c] sm:$0xf]
        %v614 = vunpack.c.l.b16 %v582
        %v615 = vunpack.c.l.b16 %v583
        %v616 = vunpack.c.l.b16 %v584
        %v617 = vunpack.c.l.b16 %v585
        %v618 = vunpack.c.l.b16 %v586
        %v619 = vunpack.c.l.b16 %v587
        %v620 = vunpack.c.l.b16 %v588
        %v621 = vunpack.c.l.b16 %v589
        %v622 = vunpack.c.l.b16 %v590
        %v623 = vunpack.c.l.b16 %v591
        %v624 = vunpack.c.l.b16 %v592
        %v625 = vunpack.c.l.b16 %v593
        %v626 = vunpack.c.l.b16 %v594
        %v627 = vunpack.c.l.b16 %v595
        %v628 = vunpack.c.l.b16 %v596
        %v629 = vunpack.c.l.b16 %v597
        %v630 = vpack.c.b16 %v615, %v614
        %v631 = vpack.c.b16 %v617, %v616
        %v632 = vpack.c.b16 %v619, %v618
        %v633 = vpack.c.b16 %v621, %v620
        %v634 = vpack.c.b16 %v623, %v622
        %v635 = vpack.c.b16 %v625, %v624
        %v636 = vpack.c.b16 %v627, %v626
        %v637 = vpack.c.b16 %v629, %v628
        %646 = vmatprep.subr.bf16.mxu0 0
        %647 = vmatpush1.bf16.msra.mxu0 %v630
        %648 = vmatprep.subr.bf16.mxu0 0
        %649 = vmatpush1.bf16.msra.mxu0 %v631
        %650 = vmatprep.subr.bf16.mxu0 0
        %651 = vmatpush1.bf16.msra.mxu0 %v632
        %652 = vmatprep.subr.bf16.mxu0 0
        %653 = vmatpush1.bf16.msra.mxu0 %v633
        %654 = vmatprep.subr.bf16.mxu0 0
        %655 = vmatpush1.bf16.msra.mxu0 %v634
        %656 = vmatprep.subr.bf16.mxu0 0
        %657 = vmatpush1.bf16.msra.mxu0 %v635
        %658 = vmatprep.subr.bf16.mxu0 0
        %659 = vmatpush1.bf16.msra.mxu0 %v636
        %660 = vmatprep.subr.bf16.mxu0 0
        %661 = vmatpush1.bf16.msra.mxu0 %v637
        %662 = vmatprep.subr.bf16.mxu0 0
        %663 = vmatpush1.bf16.msra.mxu0 0
        %664 = vmatprep.subr.bf16.mxu0 0
        %665 = vmatpush1.bf16.msra.mxu0 0
        %666 = vmatprep.subr.bf16.mxu0 0
        %667 = vmatpush1.bf16.msra.mxu0 0
        %668 = vmatprep.subr.bf16.mxu0 0
        %669 = vmatpush1.bf16.msra.mxu0 0
        %670 = vmatprep.subr.bf16.mxu0 0
        %671 = vmatpush1.bf16.msra.mxu0 0
        %672 = vmatprep.subr.bf16.mxu0 0
        %673 = vmatpush1.bf16.msra.mxu0 0
        %674 = vmatprep.subr.bf16.mxu0 0
        %675 = vmatpush1.bf16.msra.mxu0 0
        %676 = vmatprep.subr.bf16.mxu0 0
        %677 = vmatpush1.bf16.msra.mxu0 0
        %678 = vmatprep.mubr.bf16.mxu0 0
        %679 = vmatmul.mubr.bf16.gmra.mrb[0].mxu0 %v258
        %v680 = vpop.f32.mrb[0].mxu0
        %v681 = vadd.f32 0.0, %v680
        %v682 = vpop.f32.mrb[0].mxu0
        %v683 = vpop.f32.mrb[0].mxu0
        %v684 = vpop.f32.mrb[0].mxu0
        %685 = vdwg.mxu0
        %s686 = scalar_lea.vmem [#allocation2], 16
        %687 = vst [vmem:[%s686] sm:$0xff] %v681
        %v688 = vmul.f32 %v681, %v681
        %689 = vadd.xlane.f32.xlu0 %v688
        %v690 = vpop.xlane.xlu0 %689
        %s691 = scalar_lea.vmem [#allocation9], 192
        %v692 = vld [vmem:[%s691] sm:$0xf]
        %v693 = vld [vmem:[%s691 + $0x4] sm:$0xf]
        %v694 = vld [vmem:[%s691 + $0x8] sm:$0xf]
        %v695 = vld [vmem:[%s691 + $0xc] sm:$0xf]
        %v696 = vld [vmem:[%s691 + $0x10] sm:$0xf]
        %v697 = vld [vmem:[%s691 + $0x14] sm:$0xf]
        %v698 = vld [vmem:[%s691 + $0x18] sm:$0xf]
        %v699 = vld [vmem:[%s691 + $0x1c] sm:$0xf]
        %v700 = vld [vmem:[%s691 + $0x20] sm:$0xf]
        %v701 = vld [vmem:[%s691 + $0x24] sm:$0xf]
        %v702 = vld [vmem:[%s691 + $0x28] sm:$0xf]
        %v703 = vld [vmem:[%s691 + $0x2c] sm:$0xf]
        %v704 = vld [vmem:[%s691 + $0x30] sm:$0xf]
        %v705 = vld [vmem:[%s691 + $0x34] sm:$0xf]
        %v706 = vld [vmem:[%s691 + $0x38] sm:$0xf]
        %v707 = vld [vmem:[%s691 + $0x3c] sm:$0xf]
        %v724 = vunpack.c.l.b16 %v692
        %v725 = vunpack.c.l.b16 %v693
        %v726 = vunpack.c.l.b16 %v694
        %v727 = vunpack.c.l.b16 %v695
        %v728 = vunpack.c.l.b16 %v696
        %v729 = vunpack.c.l.b16 %v697
        %v730 = vunpack.c.l.b16 %v698
        %v731 = vunpack.c.l.b16 %v699
        %v732 = vunpack.c.l.b16 %v700
        %v733 = vunpack.c.l.b16 %v701
        %v734 = vunpack.c.l.b16 %v702
        %v735 = vunpack.c.l.b16 %v703
        %v736 = vunpack.c.l.b16 %v704
        %v737 = vunpack.c.l.b16 %v705
        %v738 = vunpack.c.l.b16 %v706
        %v739 = vunpack.c.l.b16 %v707
        %v740 = vpack.c.b16 %v725, %v724
        %v741 = vpack.c.b16 %v727, %v726
        %v742 = vpack.c.b16 %v729, %v728
        %v743 = vpack.c.b16 %v731, %v730
        %v744 = vpack.c.b16 %v733, %v732
        %v745 = vpack.c.b16 %v735, %v734
        %v746 = vpack.c.b16 %v737, %v736
        %v747 = vpack.c.b16 %v739, %v738
        %756 = vmatprep.subr.bf16.mxu0 0
        %757 = vmatpush1.bf16.msra.mxu0 %v740
        %758 = vmatprep.subr.bf16.mxu0 0
        %759 = vmatpush1.bf16.msra.mxu0 %v741
        %760 = vmatprep.subr.bf16.mxu0 0
        %761 = vmatpush1.bf16.msra.mxu0 %v742
        %762 = vmatprep.subr.bf16.mxu0 0
        %763 = vmatpush1.bf16.msra.mxu0 %v743
        %764 = vmatprep.subr.bf16.mxu0 0
        %765 = vmatpush1.bf16.msra.mxu0 %v744
        %766 = vmatprep.subr.bf16.mxu0 0
        %767 = vmatpush1.bf16.msra.mxu0 %v745
        %768 = vmatprep.subr.bf16.mxu0 0
        %769 = vmatpush1.bf16.msra.mxu0 %v746
        %770 = vmatprep.subr.bf16.mxu0 0
        %771 = vmatpush1.bf16.msra.mxu0 %v747
        %772 = vmatprep.subr.bf16.mxu0 0
        %773 = vmatpush1.bf16.msra.mxu0 0
        %774 = vmatprep.subr.bf16.mxu0 0
        %775 = vmatpush1.bf16.msra.mxu0 0
        %776 = vmatprep.subr.bf16.mxu0 0
        %777 = vmatpush1.bf16.msra.mxu0 0
        %778 = vmatprep.subr.bf16.mxu0 0
        %779 = vmatpush1.bf16.msra.mxu0 0
        %780 = vmatprep.subr.bf16.mxu0 0
        %781 = vmatpush1.bf16.msra.mxu0 0
        %782 = vmatprep.subr.bf16.mxu0 0
        %783 = vmatpush1.bf16.msra.mxu0 0
        %784 = vmatprep.subr.bf16.mxu0 0
        %785 = vmatpush1.bf16.msra.mxu0 0
        %786 = vmatprep.subr.bf16.mxu0 0
        %787 = vmatpush1.bf16.msra.mxu0 0
        %788 = vmatprep.mubr.bf16.mxu0 0
        %789 = vmatmul.mubr.bf16.gmra.mrb[0].mxu0 %v258
        %v790 = vpop.f32.mrb[0].mxu0
        %v791 = vadd.f32 0.0, %v790
        %v792 = vpop.f32.mrb[0].mxu0
        %v793 = vpop.f32.mrb[0].mxu0
        %v794 = vpop.f32.mrb[0].mxu0
        %795 = vdwg.mxu0
        %s796 = scalar_lea.vmem [#allocation2], 24
        %797 = vst [vmem:[%s796] sm:$0xff] %v791
        %v798 = vmul.f32 %v791, %v791
        %799 = vadd.xlane.f32.xlu0 %v798
        %v800 = vpop.xlane.xlu0 %799
        %v801 = vmax.f32 %v470, 1e-16
        %v802 = vrsqrt.pop %v801
        %v803 = vmul.f32 %v801, %v802
        %vm804 = vcmp.eq.f32.partialorder %v801, inf
        %v805 = vsel %vm804, %v801, %v803
        %vm806 = vcmp.eq.f32.partialorder %v801, 0.0
        %v807 = vand.u32 %v801, 2147483648
        %v808 = vsel %vm806, %v807, %v805
        %v809 = vmul.f32 %v808, -5.0
        %v810 = vmax.f32 %v580, 1e-16
        %v811 = vrsqrt.pop %v810
        %v812 = vmul.f32 %v810, %v811
        %vm813 = vcmp.eq.f32.partialorder %v810, inf
        %v814 = vsel %vm813, %v810, %v812
        %vm815 = vcmp.eq.f32.partialorder %v810, 0.0
        %v816 = vand.u32 %v810, 2147483648
        %v817 = vsel %vm815, %v816, %v814
        %v818 = vmul.f32 %v817, -5.0
        %v819 = vmax.f32 %v690, 1e-16
        %v820 = vrsqrt.pop %v819
        %v821 = vmul.f32 %v819, %v820
        %vm822 = vcmp.eq.f32.partialorder %v819, inf
        %v823 = vsel %vm822, %v819, %v821
        %vm824 = vcmp.eq.f32.partialorder %v819, 0.0
        %v825 = vand.u32 %v819, 2147483648
        %v826 = vsel %vm824, %v825, %v823
        %v827 = vmul.f32 %v826, -5.0
        %v828 = vmax.f32 %v800, 1e-16
        %v829 = vrsqrt.pop %v828
        %v830 = vmul.f32 %v828, %v829
        %vm831 = vcmp.eq.f32.partialorder %v828, inf
        %v832 = vsel %vm831, %v828, %v830
        %vm833 = vcmp.eq.f32.partialorder %v828, 0.0
        %v834 = vand.u32 %v828, 2147483648
        %v835 = vsel %vm833, %v834, %v832
        %v836 = vmul.f32 %v835, -5.0
        %v837 = vmax.f32 %v809, %v818
        %v838 = vmax.f32 %v837, %v827
        %v839 = vmax.f32 %v838, %v836
        %v840 = vsub.f32 %v809, %v839
        %v841 = vmul.f32 %v840, 1.442695
        %v842 = vpow.pop %v841
        %v843 = vsub.f32 %v818, %v839
        %v844 = vmul.f32 %v843, 1.442695
        %v845 = vpow.pop %v844
        %v846 = vsub.f32 %v827, %v839
        %v847 = vmul.f32 %v846, 1.442695
        %v848 = vpow.pop %v847
        %v849 = vsub.f32 %v836, %v839
        %v850 = vmul.f32 %v849, 1.442695
        %v851 = vpow.pop %v850
        %v852 = vadd.f32 %v842, %v845
        %v853 = vadd.f32 %v852, %v848
        %v854 = vadd.f32 %v853, %v851
        %v855 = vrcp.pop %v854
        %s856 = sld [smem:[#allocation10]]
        %v857 = vstv %s856
        %v858 = vmul.f32 %v857, %v842
        %v859 = vmul.f32 %v858, %v855
        %v860 = vld [vmem:[#allocation2] sm:$0xff]
        %v861 = vmul.f32 %v859, %v860
        %s862 = sld [smem:[#allocation10 + $0x1]]
        %v863 = vstv %s862
        %v864 = vmul.f32 %v863, %v845
        %v865 = vmul.f32 %v864, %v855
        %v866 = vld [vmem:[%s576] sm:$0xff]
        %v867 = vmul.f32 %v865, %v866
        %v868 = vadd.f32 %v861, %v867
        %s869 = sld [smem:[#allocation10 + $0x2]]
        %v870 = vstv %s869
        %v871 = vmul.f32 %v870, %v848
        %v872 = vmul.f32 %v871, %v855
        %v873 = vld [vmem:[%s686] sm:$0xff]
        %v874 = vmul.f32 %v872, %v873
        %v875 = vadd.f32 %v868, %v874
        %s876 = sld [smem:[#allocation10 + $0x3]]
        %v877 = vstv %s876
        %v878 = vmul.f32 %v877, %v851
        %v879 = vmul.f32 %v878, %v855
        %v880 = vld [vmem:[%s796] sm:$0xff]
        %v881 = vmul.f32 %v879, %v880
        %v882 = vadd.f32 %v875, %v881
        %v883 = vadd.f32 %v257, %v358
        %v884 = vsub.f32 %v883, %v882
        %v885 = vmul.f32 %v884, %v884
        %886 = vadd.xlane.f32.xlu0 %v885
        %v887 = vpop.xlane.xlu0 %886
        %v888 = vmax.f32 %v887, 1e-24
        %v889 = vrsqrt.pop %v888
        %v890 = vmul.f32 %v884, %v889
        %891 = vst [vmem:[%s255] sm:$0xff] %v890
        %s892 = sand.u32 %s120, 1
        %s893 = scalar_lea.sflag [#allocation5], %s892
        %s894 = sand.u32 %s120, 1
        %s895 = smul.addr %s894, 8
        %s896 = scalar_lea.vmem [#allocation11], %s895
        // Predicated region
        $region53: #{tpu_custom_call.1} parent=35 // pred_check
          %p897 = pneg %p130
        $region54: #{tpu_custom_call.1} parent=35 // pred_check_branch
          %899 = sbr.rel (%p897) target = $region56
        $region55: #{tpu_custom_call.1} parent=35 // pred_region
          %s901 = ssub.s32 128, 128
          %902 = vsyncadd %s893, %s901
          %s903 = smul.addr %s23, 128
          %s904 = scalar_lea.hbm %s4, %s903
          %s906 = sshll.u32 %s896, 4
          %s907 = int_to_ptr.vmem [resolvable:$true] %s906
          %909 = dma.vmem_to_hbm [thread:$0]  %s907, 128, %s904, %s893
        $region56: #{tpu_custom_call.1} parent=35 // pred_fallthru
          _
      $region36: #{tpu_custom_call.1} parent=5 // pred_fallthru
        _
      %p910 = scmp.le.s32.totalorder 2, %s18
      // Predicated region
      $region57: #{tpu_custom_call.1} parent=5 // pred_check
        %p911 = pneg %p910
      $region58: #{tpu_custom_call.1} parent=5 // pred_check_branch
        %913 = sbr.rel (%p911) target = $region60
      $region59: #{tpu_custom_call.1} parent=5 // pred_region
        %s914 = ssub.s32 %s18, 2
        // Predicated region
        $region61: #{tpu_custom_call.1} parent=59 // pred_check
          %p915 = pneg %p136
        $region62: #{tpu_custom_call.1} parent=59 // pred_check_branch
          %917 = sbr.rel (%p915) target = $region64
        $region63: #{tpu_custom_call.1} parent=59 // pred_region
          %s918 = sand.u32 %s121, 1
          %s919 = scalar_lea.sflag [#allocation5], %s918
          %s920 = sand.u32 %s121, 1
          %s921 = smul.addr %s920, 8
          %s922 = scalar_lea.vmem [#allocation11], %s921
          %923 = dma.done %s919, 128
        $region64: #{tpu_custom_call.1} parent=59 // pred_fallthru
          _
      $region60: #{tpu_custom_call.1} parent=5 // pred_fallthru
        _
    $region6: #{tpu_custom_call.1} parent=1 // loop_footer
      %s22 = sadd.s32 1, %s18
    $region7: #{tpu_custom_call.1} parent=1 // loop_footer_branch
      %17 = sbr.rel target = $region3
    $region8: #{tpu_custom_call.1} parent=1 // loop_exit
      _
    %924 = vsyncpa [#allocation4], 1
    %s925 = scalar_lea.sflag [#allocation4], 1
    %926 = vsyncpa %s925, 1
    %927 = vsyncpa [#allocation8], 1
    %928 = vsyncpa [#allocation5], 1
    %s929 = scalar_lea.sflag [#allocation5], 1
    %930 = vsyncpa %s929, 1
    %931 = vsyncpa [#allocation6], 1
    %s932 = scalar_lea.sflag [#allocation6], 1
    %933 = vsyncpa %s932, 1

</llo_original>
